<compile_context>
chip_gen: v5e
topology: v5e:2x2
jax: 0.10.0
libtpu: 0.0.40
codegen_flags: <defaults>
</compile_context>

<pallas_src>
import functools

import jax
import jax.numpy as jnp
from jax.experimental import pallas as pl
from jax.experimental.pallas import tpu as pltpu


_LANE = 128     # lane (last-dim) tiling unit
_SUBLANE = 8    # sublane (second-to-last-dim) tiling unit


def _round_up(n, m):
    return ((n + m - 1) // m) * m


# -----------------------------------------------------------------------------
# Fused MLP kernel body: the whole network in one pallas_call. Intermediate
# activations never leave vregs/VMEM; only the final (unpadded) output is
# written back to HBM.
# -----------------------------------------------------------------------------
def _mlp_kernel(*refs, num_layers):
    """refs = (x_ref, w0, b0, w1, b1, ..., o_ref).

    Hidden feature dims are pre-padded (once, at init) to multiples of 128;
    the input and output feature dims keep their true sizes (full-dim blocks).
    Accumulation, bias add and tanh stay f32 (tanh -> EUP slot; v5e has no
    bf16 VPU/EUP); only the dot operands take the weights' storage dtype.
    """
    x_ref, o_ref, wb = refs[0], refs[-1], refs[1:-1]
    h = x_ref[...].astype(jnp.float32)
    for i in range(num_layers):
        w = wb[2 * i][...]
        b = wb[2 * i + 1][...]          # (1, Fout) -> broadcasts over batch rows
        h = jnp.dot(h.astype(w.dtype), w, preferred_element_type=jnp.float32) + b
        if i < num_layers - 1:
            h = jnp.tanh(h)
    o_ref[...] = h.astype(o_ref.dtype)


# -----------------------------------------------------------------------------
# One-time parameter preparation (perf feedback: do NOT pad per call).
# -----------------------------------------------------------------------------
def pad_params(params, *, weight_dtype=jnp.float32):
    """Init-time preparation of (W, b) for the kernel. Call once / cache.

    * Weights are stored [in, out] (transposed vs. PyTorch's [out, in]) so the
      kernel computes y = x @ W + b directly on the MXU.
    * Hidden dims are zero-padded to multiples of 128 (lane-dense
      intermediates).  Layer-0's input dim and the last layer's output dim stay
      UNPADDED so x needs no host padding and the kernel writes an unpadded
      output (full-dim BlockSpec exemption) -- no trailing slice.
    * Zero padding is exact: padded input rows see zero activations, padded
      output cols get zero weights + zero bias, tanh(0) = 0.
    * weight_dtype=jnp.bfloat16 halves weight DMA bytes and hits the native
      bf16 MXU path (v6e/v7x); biases stay f32 (f32 accumulate / f32 tanh).
    """
    n = len(params)
    padded = []
    for l, (w, b) in enumerate(params):
        fin, fout = w.shape
        fin_p = fin if l == 0 else _round_up(fin, _LANE)
        fout_p = fout if l == n - 1 else _round_up(fout, _LANE)
        w_p = jnp.pad(w, ((0, fin_p - fin), (0, fout_p - fout))).astype(weight_dtype)
        b_p = jnp.pad(b, (0, fout_p - fout)).astype(jnp.float32).reshape(1, fout_p)
        padded.append((w_p, b_p))
    return padded


# -----------------------------------------------------------------------------
# Probe: can this jax build single-buffer a grid-invariant BlockSpec via
# pipeline_mode=pl.Buffered(1)?  (Halves resident weight VMEM -- v7x item.)
# Falls back to default double-buffering if not supported.
# -----------------------------------------------------------------------------
@functools.lru_cache(maxsize=None)
def _single_buffer_weights_supported():
    def k(x_ref, w_ref, o_ref):
        o_ref[...] = x_ref[...] + w_ref[...]
    try:
        f = pl.pallas_call(
            k,
            out_shape=jax.ShapeDtypeStruct((16, 128), jnp.float32),
            grid=(2,),
            in_specs=[
                pl.BlockSpec((8, 128), lambda i: (i, 0)),
                pl.BlockSpec((8, 128), lambda i: (0, 0),
                             pipeline_mode=pl.Buffered(1)),
            ],
            out_specs=pl.BlockSpec((8, 128), lambda i: (i, 0)),
        )
        jax.block_until_ready(
            f(jnp.zeros((16, 128), jnp.float32), jnp.ones((8, 128), jnp.float32)))
        return True
    except Exception:
        return False


def _const_block_spec(shape, single_buffer):
    """BlockSpec for a grid-invariant (weight/bias) operand."""
    if single_buffer:
        # Constant index_map => double-buffering buys nothing; Buffered(1)
        # halves resident weight VMEM (matters on v7x / large hidden dims).
        return pl.BlockSpec(shape, lambda i: (0, 0), pipeline_mode=pl.Buffered(1))
    return pl.BlockSpec(shape, lambda i: (0, 0))


# -----------------------------------------------------------------------------
# Forward pass wrapper.
# -----------------------------------------------------------------------------
def fully_connected_forward(padded_params, x, *, batch_tile=512,
                            small_batch_cutoff=128,
                            single_buffer_weights=False):
    """Forward pass of FullyConnected as ONE fused Pallas kernel.

    padded_params: output of `pad_params` (hidden dims lane-padded at init).
    x: [B, F0] -> [B, F_last].  No host-side pad/slice of x or the output on
    the common path.
    """
    B, F0 = x.shape
    num_layers = len(padded_params)
    if padded_params[0][0].shape[0] != F0:
        raise ValueError("x feature dim does not match layer-0 weight")
    f_out = padded_params[-1][0].shape[1]
    out_dtype = x.dtype

    flat_wb = [t for wb in padded_params for t in wb]
    kernel = functools.partial(_mlp_kernel, num_layers=num_layers)

    # Small batch: one VMEM-resident block, no grid / pipelining scaffolding,
    # no padding anywhere (full-array blocks are exempt from the (8,128) rule).
    if B <= small_batch_cutoff:
        return pl.pallas_call(
            kernel,
            out_shape=jax.ShapeDtypeStruct((B, f_out), out_dtype),
        )(x, *flat_wb)

    # Tiled path: >=2 batch tiles with an even count so v7x's two TensorCores
    # split the "parallel" axis evenly; each tile <= batch_tile rows (128-row
    # tiles reach only ~30% of HBM roofline vs ~85% at 512) and a multiple of 8.
    num_tiles = max(2, pl.cdiv(B, batch_tile))
    num_tiles += num_tiles % 2
    tile = min(batch_tile, _round_up(pl.cdiv(B, num_tiles), _SUBLANE))
    num_tiles = pl.cdiv(B, tile)
    b_pad = tile * num_tiles

    x_in = x
    if b_pad != B:
        # Ragged batch only: pad rows (never feature dims) and slice them back
        # off below.  Exact-multiple batches skip both extra HBM passes.
        x_in = jnp.pad(x, ((0, b_pad - B), (0, 0)))

    in_specs = [pl.BlockSpec((tile, F0), lambda i: (i, 0))]   # F0 = full dim
    for w, b in padded_params:
        in_specs.append(_const_block_spec(w.shape, single_buffer_weights))
        in_specs.append(_const_block_spec(b.shape, single_buffer_weights))
    # Unpadded lane width on the output: 8x fewer HBM write bytes than a
    # 128-padded output + trailing slice (accepting vst.msk partial stores).
    out_specs = pl.BlockSpec((tile, f_out), lambda i: (i, 0))

    # Raise the scoped VMEM limit only when the footprint estimate exceeds the
    # 32 MiB default (keeps headroom, esp. on v7x's 64 MiB physical VMEM).
    wb_bufs = 1 if single_buffer_weights else 2
    wb_bytes = sum(int(w.size) * w.dtype.itemsize + int(b.size) * b.dtype.itemsize
                   for w, b in padded_params)
    widest = max([F0] + [w.shape[1] for w, _ in padded_params])
    est = (2 * tile * F0 * x.dtype.itemsize            # double-buffered x tiles
           + 2 * tile * f_out * out_dtype.itemsize     # double-buffered out tiles
           + wb_bufs * wb_bytes                        # resident weights/biases
           + 2 * tile * widest * 4)                    # live f32 activations + slack
    vmem_limit = (int(min(2 * est, 100 * 1024 * 1024))
                  if est > 30 * 1024 * 1024 else None)

    out = pl.pallas_call(
        kernel,
        out_shape=jax.ShapeDtypeStruct((b_pad, f_out), out_dtype),
        grid=(num_tiles,),
        in_specs=in_specs,
        out_specs=out_specs,
        compiler_params=pltpu.CompilerParams(
            dimension_semantics=("parallel",),
            vmem_limit_bytes=vmem_limit),
    )(x_in, *flat_wb)
    return out if b_pad == B else out[:B]


# -----------------------------------------------------------------------------
# Init + reference (pure JAX) for correctness checks.
# -----------------------------------------------------------------------------
def init_fully_connected(key, sizes, dtype=jnp.float32):
    """Deterministic init mirroring nn.Linear's default U(-1/sqrt(fan_in), +)."""
    params = []
    for i in range(len(sizes) - 1):
        fan_in, fan_out = sizes[i], sizes[i + 1]
        key, kw, kb = jax.random.split(key, 3)
        bound = 1.0 / jnp.sqrt(jnp.asarray(fan_in, dtype))
        # stored as [in, out] (transposed relative to PyTorch's [out, in])
        w = jax.random.uniform(kw, (fan_in, fan_out), dtype, -bound, bound)
        b = jax.random.uniform(kb, (fan_out,), dtype, -bound, bound)
        params.append((w, b))
    return params


def _reference_forward(params, x):
    # Note: both this jnp reference and the kernel's jnp.dot use TPU default
    # matmul precision; wrap in jax.default_matmul_precision("highest") if
    # strict fp32 parity with CPU/PyTorch is required.
    n = len(params)
    for i, (w, b) in enumerate(params):
        x = x @ w + b
        if i < n - 1:
            x = jnp.tanh(x)
    return x


if __name__ == "__main__":
    # TODO(synk): dropout=True variant (nn.Dropout) not implemented; the module
    # default (dropout=False) adds no dropout layers, matching this forward.
    sizes = [32, 64, 48, 16]     # Linear+Tanh, Linear+Tanh, Linear
    key = jax.random.PRNGKey(0)
    key, kp = jax.random.split(key)
    params = init_fully_connected(kp, sizes)

    # Perf: pad/transpose params ONCE outside the per-call path, and probe the
    # Buffered(1) single-buffer-weights support once.
    padded_f32 = pad_params(params)
    single_buf = _single_buffer_weights_supported()

    fwd = jax.jit(functools.partial(fully_connected_forward,
                                    single_buffer_weights=single_buf))

    # Small batch -> grid-less single-block path (no pads, no slices).
    key, kx1 = jax.random.split(key)
    x_small = jax.random.normal(kx1, (8, sizes[0]), jnp.float32)
    out_small = jax.block_until_ready(fwd(padded_f32, x_small))
    ref_small = _reference_forward(params, x_small)
    assert out_small.shape == (8, sizes[-1])
    assert jnp.allclose(out_small, ref_small, atol=1e-4, rtol=1e-4)

    # Larger batch -> two 512-row "parallel" tiles (exact multiple: no host
    # pad of x, no output slice).
    key, kx2 = jax.random.split(key)
    x_big = jax.random.normal(kx2, (1024, sizes[0]), jnp.float32)
    out_big = jax.block_until_ready(fwd(padded_f32, x_big))
    ref_big = _reference_forward(params, x_big)
    assert out_big.shape == (1024, sizes[-1])
    assert jnp.allclose(out_big, ref_big, atol=1e-4, rtol=1e-4)

    # Optional bf16 weight storage (v6e/v7x item): same kernel, f32 accumulate
    # and f32 tanh, looser numerics.
    padded_bf16 = pad_params(params, weight_dtype=jnp.bfloat16)
    out_bf16 = jax.block_until_ready(fwd(padded_bf16, x_big))
    assert out_bf16.shape == (1024, sizes[-1])
    assert jnp.allclose(out_bf16, ref_big, atol=5e-2, rtol=5e-2)

    print("KERNEL_OK")
</pallas_src>

<mosaic_0001>
module attributes {stable_mosaic.version = 11 : i64} {
  func.func @k(%arg0: i32, %arg1: memref<8x128xf32, #tpu.memory_space<vmem>>, %arg2: memref<8x128xf32, #tpu.memory_space<vmem>>, %arg3: memref<8x128xf32, #tpu.memory_space<vmem>>) attributes {dimension_semantics = [#tpu.dimension_semantics<arbitrary>], iteration_bounds = array<i64: 2>, scalar_prefetch = 0 : i64, scratch_operands = 0 : i64, tpu.core_type = #tpu.core_type<tc>, window_params = [{transform_indices = @transform_0, window_bounds = array<i64: 8, 128>}, {pipeline_mode = #tpu.pipeline_mode<synchronous>, transform_indices = @transform_1, window_bounds = array<i64: 8, 128>}, {transform_indices = @transform_2, window_bounds = array<i64: 8, 128>}]} {
    %c0 = arith.constant 0 : index
    %c0_0 = arith.constant 0 : index
    %0 = vector.load %arg1[%c0, %c0_0] : memref<8x128xf32, #tpu.memory_space<vmem>>, vector<8x128xf32>
    %c0_1 = arith.constant 0 : index
    %c0_2 = arith.constant 0 : index
    %1 = vector.load %arg2[%c0_1, %c0_2] : memref<8x128xf32, #tpu.memory_space<vmem>>, vector<8x128xf32>
    %2 = arith.addf %0, %1 : vector<8x128xf32>
    %c0_3 = arith.constant 0 : index
    %c0_4 = arith.constant 0 : index
    %3 = vector.load %arg3[%c0_3, %c0_4] : memref<8x128xf32, #tpu.memory_space<vmem>>, vector<8x128xf32>
    tpu.vector_store %arg3[%c0_3, %c0_4], %2 {strides = array<i32>} : memref<8x128xf32, #tpu.memory_space<vmem>>, vector<8x128xf32>,
    return
  }
  func.func @transform_0(%arg0: i32) -> (i32, i32) {
    %c0_i32 = arith.constant 0 : i32
    %c0_i32_0 = arith.constant 0 : i32
    return %arg0, %c0_i32 : i32, i32
  }
  func.func @transform_1(%arg0: i32) -> (i32, i32) {
    %c0_i32 = arith.constant 0 : i32
    %c0_i32_0 = arith.constant 0 : i32
    %c0_i32_1 = arith.constant 0 : i32
    return %c0_i32, %c0_i32_0 : i32, i32
  }
  func.func @transform_2(%arg0: i32) -> (i32, i32) {
    %c0_i32 = arith.constant 0 : i32
    %c0_i32_0 = arith.constant 0 : i32
    return %arg0, %c0_i32 : i32, i32
  }
}

module attributes {stable_mosaic.version = 11 : i64} {
  func.func @_mlp_kernel(%arg0: memref<8x32xf32, #tpu.memory_space<vmem>>, %arg1: memref<32x128xf32, #tpu.memory_space<vmem>>, %arg2: memref<1x128xf32, #tpu.memory_space<vmem>>, %arg3: memref<128x128xf32, #tpu.memory_space<vmem>>, %arg4: memref<1x128xf32, #tpu.memory_space<vmem>>, %arg5: memref<128x16xf32, #tpu.memory_space<vmem>>, %arg6: memref<1x16xf32, #tpu.memory_space<vmem>>, %arg7: memref<8x16xf32, #tpu.memory_space<vmem>>) attributes {dimension_semantics = [], scalar_prefetch = 0 : i64, scratch_operands = 0 : i64, tpu.core_type = #tpu.core_type<tc>} {
    %c0 = arith.constant 0 : index
    %c0_0 = arith.constant 0 : index
    %0 = vector.load %arg0[%c0, %c0_0] : memref<8x32xf32, #tpu.memory_space<vmem>>, vector<8x32xf32>
    %c0_1 = arith.constant 0 : index
    %c0_2 = arith.constant 0 : index
    %1 = vector.load %arg1[%c0_1, %c0_2] : memref<32x128xf32, #tpu.memory_space<vmem>>, vector<32x128xf32>
    %c0_3 = arith.constant 0 : index
    %c0_4 = arith.constant 0 : index
    %2 = vector.load %arg2[%c0_3, %c0_4] : memref<1x128xf32, #tpu.memory_space<vmem>>, vector<1x128xf32>
    %cst = arith.constant dense<0.000000e+00> : vector<8x128xf32>
    %3 = tpu.matmul %0, %1, %cst {dimension_numbers = #tpu.dot_dimension_numbers<[1], [0], [0], [1], [0, 0, 1, 1], [], []>} : vector<8x32xf32>, vector<32x128xf32>, vector<8x128xf32> -> vector<8x128xf32>
    %4 = vector.broadcast %2 : vector<1x128xf32> to vector<8x128xf32>
    %5 = arith.addf %3, %4 : vector<8x128xf32>
    %6 = math.tanh %5 : vector<8x128xf32>
    %c0_5 = arith.constant 0 : index
    %c0_6 = arith.constant 0 : index
    %7 = vector.load %arg3[%c0_5, %c0_6] : memref<128x128xf32, #tpu.memory_space<vmem>>, vector<128x128xf32>
    %c0_7 = arith.constant 0 : index
    %c0_8 = arith.constant 0 : index
    %8 = vector.load %arg4[%c0_7, %c0_8] : memref<1x128xf32, #tpu.memory_space<vmem>>, vector<1x128xf32>
    %cst_9 = arith.constant dense<0.000000e+00> : vector<8x128xf32>
    %9 = tpu.matmul %6, %7, %cst_9 {dimension_numbers = #tpu.dot_dimension_numbers<[1], [0], [0], [1], [0, 0, 1, 1], [], []>} : vector<8x128xf32>, vector<128x128xf32>, vector<8x128xf32> -> vector<8x128xf32>
    %10 = vector.broadcast %8 : vector<1x128xf32> to vector<8x128xf32>
    %11 = arith.addf %9, %10 : vector<8x128xf32>
    %12 = math.tanh %11 : vector<8x128xf32>
    %c0_10 = arith.constant 0 : index
    %c0_11 = arith.constant 0 : index
    %13 = vector.load %arg5[%c0_10, %c0_11] : memref<128x16xf32, #tpu.memory_space<vmem>>, vector<128x16xf32>
    %c0_12 = arith.constant 0 : index
    %c0_13 = arith.constant 0 : index
    %14 = vector.load %arg6[%c0_12, %c0_13] : memref<1x16xf32, #tpu.memory_space<vmem>>, vector<1x16xf32>
    %cst_14 = arith.constant dense<0.000000e+00> : vector<8x16xf32>
    %15 = tpu.matmul %12, %13, %cst_14 {dimension_numbers = #tpu.dot_dimension_numbers<[1], [0], [0], [1], [0, 0, 1, 1], [], []>} : vector<8x128xf32>, vector<128x16xf32>, vector<8x16xf32> -> vector<8x16xf32>
    %16 = vector.broadcast %14 : vector<1x16xf32> to vector<8x16xf32>
    %17 = arith.addf %15, %16 : vector<8x16xf32>
    %c0_15 = arith.constant 0 : index
    %c0_16 = arith.constant 0 : index
    %18 = vector.load %arg7[%c0_15, %c0_16] : memref<8x16xf32, #tpu.memory_space<vmem>>, vector<8x16xf32>
    tpu.vector_store %arg7[%c0_15, %c0_16], %17 {strides = array<i32>} : memref<8x16xf32, #tpu.memory_space<vmem>>, vector<8x16xf32>,
    return
  }
}

</mosaic_0001>

<llo_original>
// kernel: tpu_custom_call.1
$region0: #{tpu_custom_call.1}
  #allocation0 [shape = 'u32[]', space=smem, size = 0x4, offset = 0x4, fixed_abs, tag = 'smem constant byte address 0x4 - core index']
  #allocation1 [shape = 'u32[72,128]{1,0:T(1,128)}', space=vmem, size = 0x9000, scoped, tag = 'internal scratch']
  %s0 = inlined_call_operand.hbm [shape: f32[16,128], index: 0, kind: input, shape index: {}]
  %s1 = inlined_call_operand.hbm [shape: f32[8,128], index: 1, kind: input, shape index: {}]
  %s2 = inlined_call_operand.hbm [shape: f32[16,128], index: 2, kind: output, shape index: {}]
  %s3 = sld [smem:[#allocation0]]
  $region49: #{tpu_custom_call.1} parent=0
    _
  %s5 = ssub.s32 1, %s3
  %s6 = scalar_select 0, %s5, %s3
  $region1: #{tpu_custom_call.1} parent=0
    #allocation2 [shape = 'u8[8192]{0}', space=vmem, size = 0x2000, scoped, tag = 'input window, operand 0']
    #allocation3 [shape = 's32[2]{0}', space=sflag, size = 0x8, scoped, tag = 'scoped memory for tpu_custom_call.1']
    #allocation4 [shape = 's32[2]{0}', space=sflag, size = 0x8, scoped, tag = 'scoped memory for tpu_custom_call.1']
    #allocation5 [shape = 'u8[4096]{0}', space=vmem, size = 0x1000, scoped, tag = 'input window, operand 1, single buffered']
    #allocation6 [shape = 's32[1]{0}', space=sflag, size = 0x4, scoped, tag = 'scoped memory for tpu_custom_call.1']
    #allocation7 [shape = 'u8[8192]{0}', space=vmem, size = 0x2000, scoped, tag = 'output window, operand 0']
    %7 = vsyncpa [#allocation3], 0
    %s8 = scalar_lea.sflag [#allocation3], 1
    %9 = vsyncpa %s8, 0
    %10 = vsyncpa [#allocation6], 0
    %11 = vsyncpa [#allocation4], 0
    %s12 = scalar_lea.sflag [#allocation4], 1
    %13 = vsyncpa %s12, 0
    loop: start=0, step=1, limit=4
    $region2: #{tpu_custom_call.1} parent=1 // loop_pre_header
      _
    $region3: #{tpu_custom_call.1} parent=1 // loop_header
      %s15 = sphi 0, %s19
      %p16 = scmp.ge.s32.totalorder %s15, 4
      %s25 = sphi 0, %s27
      %s28 = sphi 0, %s25
      %s29 = sphi 0, %s28
      %s45 = sphi 0, %s29
      %s49 = sphi 0, %s49
      %s51 = sphi 0, %s49
      %s52 = sphi 0, %s51
      %s66 = sphi 0, %s52
      %s72 = sphi 0, %s74
      %s75 = sphi 0, %s72
      %s76 = sphi 0, %s75
      %s92 = sphi 0, %s76
    $region4: #{tpu_custom_call.1} parent=1 // loop_header_branch
      %18 = sbr.rel (%p16) target = $region8
    $region5: #{tpu_custom_call.1} parent=1 // loop_body
      %s20 = ssub.s32 %s15, 1
      %s21 = ssub.s32 %s15, 2
      %s22 = sadd.s32 %s15, 1
      %s23 = ssub.s32 %s15, %s22
      %p24 = scmp.eq.s32.totalorder %s23, 0
      %s26 = sadd.s32 %s25, 1
      %s27 = scalar_select %p24, %s25, %s26
      %p30 = pneg %p24
      %p31 = scmp.eq.s32.totalorder %s15, 1
      %p32 = por %p30, %p31
      %p33 = scmp.ne.s32.totalorder %s25, %s28
      %p34 = scmp.eq.s32.totalorder %s15, 0
      %p35 = por %p33, %p34
      %p36 = scmp.ne.s32.totalorder %s25, %s28
      %p37 = scmp.eq.s32.totalorder %s20, 1
      %p38 = por %p36, %p37
      %p39 = scmp.ne.s32.totalorder %s28, %s29
      %p40 = scmp.eq.s32.totalorder %s20, 0
      %p41 = por %p39, %p40
      %p42 = scmp.ne.s32.totalorder %s28, %s29
      %p43 = scmp.eq.s32.totalorder %s21, 1
      %p44 = por %p42, %p43
      %p46 = scmp.ne.s32.totalorder %s29, %s45
      %p47 = scmp.eq.s32.totalorder %s21, 0
      %p48 = por %p46, %p47
      %s50 = sadd.s32 %s49, 1
      %p53 = scmp.eq.s32.totalorder %s15, 1
      %p54 = scmp.ne.s32.totalorder %s49, %s51
      %p55 = scmp.eq.s32.totalorder %s15, 0
      %p56 = por %p54, %p55
      %p57 = scmp.ne.s32.totalorder %s49, %s51
      %p58 = scmp.eq.s32.totalorder %s20, 1
      %p59 = por %p57, %p58
      %p60 = scmp.ne.s32.totalorder %s51, %s52
      %p61 = scmp.eq.s32.totalorder %s20, 0
      %p62 = por %p60, %p61
      %p63 = scmp.ne.s32.totalorder %s51, %s52
      %p64 = scmp.eq.s32.totalorder %s21, 1
      %p65 = por %p63, %p64
      %p67 = scmp.ne.s32.totalorder %s52, %s66
      %p68 = scmp.eq.s32.totalorder %s21, 0
      %p69 = por %p67, %p68
      %s70 = ssub.s32 %s15, %s22
      %p71 = scmp.eq.s32.totalorder %s70, 0
      %s73 = sadd.s32 %s72, 1
      %s74 = scalar_select %p71, %s72, %s73
      %p77 = pneg %p71
      %p78 = scmp.eq.s32.totalorder %s15, 1
      %p79 = por %p77, %p78
      %p80 = scmp.ne.s32.totalorder %s72, %s75
      %p81 = scmp.eq.s32.totalorder %s15, 0
      %p82 = por %p80, %p81
      %p83 = scmp.ne.s32.totalorder %s72, %s75
      %p84 = scmp.eq.s32.totalorder %s20, 1
      %p85 = por %p83, %p84
      %p86 = scmp.ne.s32.totalorder %s75, %s76
      %p87 = scmp.eq.s32.totalorder %s20, 0
      %p88 = por %p86, %p87
      %p89 = scmp.ne.s32.totalorder %s75, %s76
      %p90 = scmp.eq.s32.totalorder %s21, 1
      %p91 = por %p89, %p90
      %p93 = scmp.ne.s32.totalorder %s76, %s92
      %p94 = scmp.eq.s32.totalorder %s21, 0
      %p95 = por %p93, %p94
      %p96 = scmp.le.s32.totalorder 1, %s15
      %p97 = scmp.lt.s32.totalorder %s15, 3
      %p98 = pnand %p96, %p97
      %p99 = pneg %p98
      // Predicated region
      $region9: #{tpu_custom_call.1} parent=5 // pred_check
        _
      $region10: #{tpu_custom_call.1} parent=5 // pred_check_branch
        %101 = sbr.rel (%p98) target = $region12
      $region11: #{tpu_custom_call.1} parent=5 // pred_region
        %s102 = ssub.s32 %s15, 1
        // Predicated region
        $region13: #{tpu_custom_call.1} parent=11 // pred_check
          %p103 = pneg %p62
        $region14: #{tpu_custom_call.1} parent=11 // pred_check_branch
          %105 = sbr.rel (%p103) target = $region16
        $region15: #{tpu_custom_call.1} parent=11 // pred_region
          %107 = vsyncadd [#allocation6], 0
          %s109 = sshll.u32 %s1, 4
          %s110 = int_to_ptr.hbm [resolvable:$true] %s109
          %s111 = sshll.u32 [#allocation5], 4
          %s112 = int_to_ptr.vmem [resolvable:$true] %s111
          %114 = dma.hbm_to_vmem [thread:$0]  %s110, 128, %s112, [#allocation6]
        $region16: #{tpu_custom_call.1} parent=11 // pred_fallthru
          _
      $region12: #{tpu_custom_call.1} parent=5 // pred_fallthru
        _
      %p115 = scmp.lt.s32.totalorder %s15, 2
      // Predicated region
      $region17: #{tpu_custom_call.1} parent=5 // pred_check
        %p116 = pneg %p115
      $region18: #{tpu_custom_call.1} parent=5 // pred_check_branch
        %118 = sbr.rel (%p116) target = $region20
      $region19: #{tpu_custom_call.1} parent=5 // pred_region
        // Predicated region
        $region21: #{tpu_custom_call.1} parent=19 // pred_check
          %p119 = pneg %p35
        $region22: #{tpu_custom_call.1} parent=19 // pred_check_branch
          %121 = sbr.rel (%p119) target = $region24
        $region23: #{tpu_custom_call.1} parent=19 // pred_region
          %s122 = sand.u32 %s25, 1
          %s123 = scalar_lea.sflag [#allocation3], %s122
          %s124 = sand.u32 %s25, 1
          %s125 = smul.addr %s124, 8
          %s126 = scalar_lea.vmem [#allocation2], %s125
          %128 = vsyncadd %s123, 0
          %s129 = smul.addr %s15, 8
          %s130 = scalar_lea.hbm %s0, %s129
          %s132 = sshll.u32 %s130, 4
          %s133 = int_to_ptr.hbm [resolvable:$true] %s132
          %s134 = sshll.u32 %s126, 4
          %s135 = int_to_ptr.vmem [resolvable:$true] %s134
          %137 = dma.hbm_to_vmem [thread:$0]  %s133, 128, %s135, %s123
        $region24: #{tpu_custom_call.1} parent=19 // pred_fallthru
          _
      $region20: #{tpu_custom_call.1} parent=5 // pred_fallthru
        _
      %p138 = scmp.le.s32.totalorder 1, %s15
      %p139 = scmp.lt.s32.totalorder %s15, 3
      %p140 = pnand %p138, %p139
      %p141 = pneg %p140
      // Predicated region
      $region25: #{tpu_custom_call.1} parent=5 // pred_check
        _
      $region26: #{tpu_custom_call.1} parent=5 // pred_check_branch
        %143 = sbr.rel (%p140) target = $region28
      $region27: #{tpu_custom_call.1} parent=5 // pred_region
        %s144 = ssub.s32 %s15, 1
        %s145 = sand.u32 %s28, 1
        %s146 = scalar_lea.sflag [#allocation3], %s145
        %s147 = sand.u32 %s28, 1
        %s148 = smul.addr %s147, 8
        %s149 = scalar_lea.vmem [#allocation2], %s148
        // Predicated region
        $region29: #{tpu_custom_call.1} parent=27 // pred_check
          %p150 = pneg %p41
        $region30: #{tpu_custom_call.1} parent=27 // pred_check_branch
          %152 = sbr.rel (%p150) target = $region32
        $region31: #{tpu_custom_call.1} parent=27 // pred_region
          %154 = dma.done %s146, 128
        $region32: #{tpu_custom_call.1} parent=27 // pred_fallthru
          _
        // Predicated region
        $region33: #{tpu_custom_call.1} parent=27 // pred_check
          %p155 = pneg %p62
        $region34: #{tpu_custom_call.1} parent=27 // pred_check_branch
          %157 = sbr.rel (%p155) target = $region36
        $region35: #{tpu_custom_call.1} parent=27 // pred_region
          %159 = dma.done [#allocation6], 128
        $region36: #{tpu_custom_call.1} parent=27 // pred_fallthru
          _
        %s160 = sand.u32 %s28, 1
        %s161 = scalar_lea.sflag [#allocation3], %s160
        %s162 = sand.u32 %s28, 1
        %s163 = smul.addr %s162, 8
        %s164 = scalar_lea.vmem [#allocation2], %s163
        %p165 = pneg %p41
        %p166 = pneg %p38
        %p167 = pneg %p62
        %p168 = pneg %p59
        %p169 = pneg %p88
        %p170 = pneg %p85
        %s171 = sand.u32 %s75, 1
        %s172 = scalar_lea.sflag [#allocation4], %s171
        %s173 = sand.u32 %s75, 1
        %s174 = smul.addr %s173, 8
        %s175 = scalar_lea.vmem [#allocation7], %s174
        %v176 = vld [vmem:[%s149] sm:$0xff]
        %v177 = vld [vmem:[#allocation5] sm:$0xff]
        %v178 = vadd.f32 %v176, %v177
        %179 = vst [vmem:[%s175] sm:$0xff] %v178
        %s180 = sand.u32 %s75, 1
        %s181 = scalar_lea.sflag [#allocation4], %s180
        %s182 = sand.u32 %s75, 1
        %s183 = smul.addr %s182, 8
        %s184 = scalar_lea.vmem [#allocation7], %s183
        // Predicated region
        $region37: #{tpu_custom_call.1} parent=27 // pred_check
          %p185 = pneg %p85
        $region38: #{tpu_custom_call.1} parent=27 // pred_check_branch
          %187 = sbr.rel (%p185) target = $region40
        $region39: #{tpu_custom_call.1} parent=27 // pred_region
          %189 = vsyncadd %s181, 0
          %s190 = smul.addr %s20, 8
          %s191 = scalar_lea.hbm %s2, %s190
          %s193 = sshll.u32 %s184, 4
          %s194 = int_to_ptr.vmem [resolvable:$true] %s193
          %s195 = sshll.u32 %s191, 4
          %s196 = int_to_ptr.hbm [resolvable:$true] %s195
          %198 = dma.vmem_to_hbm [thread:$0]  %s194, 128, %s196, %s181
        $region40: #{tpu_custom_call.1} parent=27 // pred_fallthru
          _
      $region28: #{tpu_custom_call.1} parent=5 // pred_fallthru
        _
      %p199 = scmp.le.s32.totalorder 2, %s15
      // Predicated region
      $region41: #{tpu_custom_call.1} parent=5 // pred_check
        %p200 = pneg %p199
      $region42: #{tpu_custom_call.1} parent=5 // pred_check_branch
        %202 = sbr.rel (%p200) target = $region44
      $region43: #{tpu_custom_call.1} parent=5 // pred_region
        %s203 = ssub.s32 %s15, 2
        // Predicated region
        $region45: #{tpu_custom_call.1} parent=43 // pred_check
          %p204 = pneg %p91
        $region46: #{tpu_custom_call.1} parent=43 // pred_check_branch
          %206 = sbr.rel (%p204) target = $region48
        $region47: #{tpu_custom_call.1} parent=43 // pred_region
          %s207 = sand.u32 %s76, 1
          %s208 = scalar_lea.sflag [#allocation4], %s207
          %s209 = sand.u32 %s76, 1
          %s210 = smul.addr %s209, 8
          %s211 = scalar_lea.vmem [#allocation7], %s210
          %213 = dma.done %s208, 128
        $region48: #{tpu_custom_call.1} parent=43 // pred_fallthru
          _
      $region44: #{tpu_custom_call.1} parent=5 // pred_fallthru
        _
    $region6: #{tpu_custom_call.1} parent=1 // loop_footer
      %s19 = sadd.s32 1, %s15
    $region7: #{tpu_custom_call.1} parent=1 // loop_footer_branch
      %14 = sbr.rel target = $region3
    $region8: #{tpu_custom_call.1} parent=1 // loop_exit
      _
    %214 = vsyncpa [#allocation3], 1
    %s215 = scalar_lea.sflag [#allocation3], 1
    %216 = vsyncpa %s215, 1
    %217 = vsyncpa [#allocation6], 1
    %218 = vsyncpa [#allocation4], 1
    %s219 = scalar_lea.sflag [#allocation4], 1
    %220 = vsyncpa %s219, 1

// kernel: fully_connected_forward.1
$region0: #{fully_connected_forward.1}
  #allocation0 [shape = 'u32[]', space=smem, size = 0x4, offset = 0x4, fixed_abs, tag = 'smem constant byte address 0x4 - core index']
  #allocation1 [shape = 'u32[72,128]{1,0:T(1,128)}', space=vmem, size = 0x9000, scoped, tag = 'internal scratch']
  %s0 = inlined_call_operand.vmem [shape: f32[8,32], index: 0, kind: input, shape index: {}]
  %s1 = inlined_call_operand.hbm [shape: f32[32,128], index: 1, kind: input, shape index: {}]
  %s2 = inlined_call_operand.vmem [shape: f32[1,128], index: 2, kind: input, shape index: {}]
  %s3 = inlined_call_operand.vmem [shape: f32[128,128], index: 3, kind: input, shape index: {}]
  %s4 = inlined_call_operand.vmem [shape: f32[1,128], index: 4, kind: input, shape index: {}]
  %s5 = inlined_call_operand.vmem [shape: f32[128,16], index: 5, kind: input, shape index: {}]
  %s6 = inlined_call_operand.vmem [shape: f32[1,16], index: 6, kind: input, shape index: {}]
  %s7 = inlined_call_operand.hbm [shape: f32[8,16], index: 7, kind: output, shape index: {}]
  %s8 = sld [smem:[#allocation0]]
  $region42: #{fully_connected_forward.1} parent=0
    _
  %s10 = ssub.s32 1, %s8
  %s11 = scalar_select 0, %s10, %s8
  $region1: #{fully_connected_forward.1} parent=0
    #allocation2 [shape = 'u8[16384]{0}', space=vmem, size = 0x4000, scoped, tag = 'input window, operand 1, single buffered']
    #allocation3 [shape = 's32[1]{0}', space=sflag, size = 0x4, scoped, tag = 'scoped memory for fully_connected_forward.1']
    #allocation4 [shape = 's32[1]{0}', space=sflag, size = 0x4, scoped, tag = 'scoped memory for fully_connected_forward.1']
    #allocation5 [shape = 'u8[4096]{0}', space=vmem, size = 0x1000, scoped, tag = 'output window, operand 0, single buffered']
    %12 = vsyncpa [#allocation3], 0
    %13 = vsyncpa [#allocation4], 0
    // Predicated region
    $region2: #{fully_connected_forward.1} parent=1 // pred_check
      _
    $region3: #{fully_connected_forward.1} parent=1 // pred_check_branch
      %15 = sbr.rel (0) target = $region5
    $region4: #{fully_connected_forward.1} parent=1 // pred_region
      _
    $region5: #{fully_connected_forward.1} parent=1 // pred_fallthru
      _
    // Predicated region
    $region6: #{fully_connected_forward.1} parent=1 // pred_check
      _
    $region7: #{fully_connected_forward.1} parent=1 // pred_check_branch
      %17 = sbr.rel (0) target = $region9
    $region8: #{fully_connected_forward.1} parent=1 // pred_region
      %19 = vsyncadd [#allocation3], 0
      %s20 = sshll.u32 %s1, 4
      %s21 = int_to_ptr.hbm [resolvable:$true] %s20
      %s22 = sshll.u32 [#allocation2], 4
      %s23 = int_to_ptr.vmem [resolvable:$true] %s22
      %28 = dma.hbm_to_vmem [thread:$0]  %s21, 512, %s23, [#allocation3], 128, 128, 8
    $region9: #{fully_connected_forward.1} parent=1 // pred_fallthru
      _
    // Predicated region
    $region10: #{fully_connected_forward.1} parent=1 // pred_check
      _
    $region11: #{fully_connected_forward.1} parent=1 // pred_check_branch
      %30 = sbr.rel (0) target = $region13
    $region12: #{fully_connected_forward.1} parent=1 // pred_region
      _
    $region13: #{fully_connected_forward.1} parent=1 // pred_fallthru
      _
    // Predicated region
    $region14: #{fully_connected_forward.1} parent=1 // pred_check
      _
    $region15: #{fully_connected_forward.1} parent=1 // pred_check_branch
      %32 = sbr.rel (0) target = $region17
    $region16: #{fully_connected_forward.1} parent=1 // pred_region
      _
    $region17: #{fully_connected_forward.1} parent=1 // pred_fallthru
      _
    // Predicated region
    $region18: #{fully_connected_forward.1} parent=1 // pred_check
      _
    $region19: #{fully_connected_forward.1} parent=1 // pred_check_branch
      %34 = sbr.rel (0) target = $region21
    $region20: #{fully_connected_forward.1} parent=1 // pred_region
      _
    $region21: #{fully_connected_forward.1} parent=1 // pred_fallthru
      _
    // Predicated region
    $region22: #{fully_connected_forward.1} parent=1 // pred_check
      _
    $region23: #{fully_connected_forward.1} parent=1 // pred_check_branch
      %36 = sbr.rel (0) target = $region25
    $region24: #{fully_connected_forward.1} parent=1 // pred_region
      _
    $region25: #{fully_connected_forward.1} parent=1 // pred_fallthru
      _
    // Predicated region
    $region26: #{fully_connected_forward.1} parent=1 // pred_check
      _
    $region27: #{fully_connected_forward.1} parent=1 // pred_check_branch
      %38 = sbr.rel (0) target = $region29
    $region28: #{fully_connected_forward.1} parent=1 // pred_region
      _
    $region29: #{fully_connected_forward.1} parent=1 // pred_fallthru
      _
    // Predicated region
    $region30: #{fully_connected_forward.1} parent=1 // pred_check
      _
    $region31: #{fully_connected_forward.1} parent=1 // pred_check_branch
      %40 = sbr.rel (0) target = $region33
    $region32: #{fully_connected_forward.1} parent=1 // pred_region
      %42 = dma.done [#allocation3], 512
    $region33: #{fully_connected_forward.1} parent=1 // pred_fallthru
      _
    %v43 = vld [vmem:[%s0] sm:$0xff]
    %v44 = vld [vmem:[#allocation2] sm:$0xff]
    %v45 = vld [vmem:[#allocation2 + $0x8] sm:$0xff]
    %v46 = vld [vmem:[#allocation2 + $0x10] sm:$0xff]
    %v47 = vld [vmem:[#allocation2 + $0x18] sm:$0xff]
    %v48 = vld [vmem:[%s2] sm:$0x1]
    %v50 = vperm.slane %v48, 0
    %vm52 = vcmask 261120
    %v54 = vsel %vm52, %v43, 0
    %56 = vmatpush.msra.mxu0 0.0
    %57 = vmatpush.msra.mxu0 0.0
    %58 = vmatpush.msra.mxu0 0.0
    %59 = vmatpush.msra.mxu0 0.0
    %60 = vmatpush.msra.mxu0 0.0
    %61 = vmatpush.msra.mxu0 0.0
    %62 = vmatpush.msra.mxu0 0.0
    %63 = vmatpush.msra.mxu0 0.0
    %64 = vmatpush.msra.mxu0 0.0
    %65 = vmatpush.msra.mxu0 0.0
    %66 = vmatpush.msra.mxu0 0.0
    %67 = vmatpush.msra.mxu0 0.0
    %68 = vmatpush.msra.mxu0 %v47
    %69 = vmatpush.msra.mxu0 %v46
    %70 = vmatpush.msra.mxu0 %v45
    %71 = vmatpush.msra.mxu0 %v44
    %72 = vmatmul.f32.gmra.mxu0 %v54
    %v73 = vpop.f32.mrf.mxu0
    %v74 = vadd.f32 %v50, %v73
    %75 = vdwg.mxu0
    %v76 = vtanh.pop %v74
    %v77 = vld [vmem:[%s3] sm:$0xff]
    %v78 = vld [vmem:[%s3 + $0x8] sm:$0xff]
    %v79 = vld [vmem:[%s3 + $0x10] sm:$0xff]
    %v80 = vld [vmem:[%s3 + $0x18] sm:$0xff]
    %v81 = vld [vmem:[%s3 + $0x20] sm:$0xff]
    %v82 = vld [vmem:[%s3 + $0x28] sm:$0xff]
    %v83 = vld [vmem:[%s3 + $0x30] sm:$0xff]
    %v84 = vld [vmem:[%s3 + $0x38] sm:$0xff]
    %v85 = vld [vmem:[%s3 + $0x40] sm:$0xff]
    %v86 = vld [vmem:[%s3 + $0x48] sm:$0xff]
    %v87 = vld [vmem:[%s3 + $0x50] sm:$0xff]
    %v88 = vld [vmem:[%s3 + $0x58] sm:$0xff]
    %v89 = vld [vmem:[%s3 + $0x60] sm:$0xff]
    %v90 = vld [vmem:[%s3 + $0x68] sm:$0xff]
    %v91 = vld [vmem:[%s3 + $0x70] sm:$0xff]
    %v92 = vld [vmem:[%s3 + $0x78] sm:$0xff]
    %v93 = vld [vmem:[%s4] sm:$0x1]
    %v95 = vperm.slane %v93, 0
    %97 = vmatpush.msra.mxu0 %v92
    %98 = vmatpush.msra.mxu0 %v91
    %99 = vmatpush.msra.mxu0 %v90
    %100 = vmatpush.msra.mxu0 %v89
    %101 = vmatpush.msra.mxu0 %v88
    %102 = vmatpush.msra.mxu0 %v87
    %103 = vmatpush.msra.mxu0 %v86
    %104 = vmatpush.msra.mxu0 %v85
    %105 = vmatpush.msra.mxu0 %v84
    %106 = vmatpush.msra.mxu0 %v83
    %107 = vmatpush.msra.mxu0 %v82
    %108 = vmatpush.msra.mxu0 %v81
    %109 = vmatpush.msra.mxu0 %v80
    %110 = vmatpush.msra.mxu0 %v79
    %111 = vmatpush.msra.mxu0 %v78
    %112 = vmatpush.msra.mxu0 %v77
    %113 = vmatmul.f32.gmra.mxu0 %v76
    %v114 = vpop.f32.mrf.mxu0
    %v115 = vadd.f32 %v95, %v114
    %116 = vdwg.mxu0
    %v117 = vtanh.pop %v115
    %v118 = vld [vmem:[%s5] sm:$0xff]
    %v119 = vld [vmem:[%s5 + $0x8] sm:$0xff]
    %v120 = vld [vmem:[%s5 + $0x10] sm:$0xff]
    %v121 = vld [vmem:[%s5 + $0x18] sm:$0xff]
    %v122 = vld [vmem:[%s5 + $0x20] sm:$0xff]
    %v123 = vld [vmem:[%s5 + $0x28] sm:$0xff]
    %v124 = vld [vmem:[%s5 + $0x30] sm:$0xff]
    %v125 = vld [vmem:[%s5 + $0x38] sm:$0xff]
    %v126 = vld [vmem:[%s5 + $0x40] sm:$0xff]
    %v127 = vld [vmem:[%s5 + $0x48] sm:$0xff]
    %v128 = vld [vmem:[%s5 + $0x50] sm:$0xff]
    %v129 = vld [vmem:[%s5 + $0x58] sm:$0xff]
    %v130 = vld [vmem:[%s5 + $0x60] sm:$0xff]
    %v131 = vld [vmem:[%s5 + $0x68] sm:$0xff]
    %v132 = vld [vmem:[%s5 + $0x70] sm:$0xff]
    %v133 = vld [vmem:[%s5 + $0x78] sm:$0xff]
    %v134 = vld [vmem:[%s6] sm:$0x1]
    %v136 = vperm.slane %v134, 0
    %138 = vmatpush.msra.mxu0 %v133
    %139 = vmatpush.msra.mxu0 %v132
    %140 = vmatpush.msra.mxu0 %v131
    %141 = vmatpush.msra.mxu0 %v130
    %142 = vmatpush.msra.mxu0 %v129
    %143 = vmatpush.msra.mxu0 %v128
    %144 = vmatpush.msra.mxu0 %v127
    %145 = vmatpush.msra.mxu0 %v126
    %146 = vmatpush.msra.mxu0 %v125
    %147 = vmatpush.msra.mxu0 %v124
    %148 = vmatpush.msra.mxu0 %v123
    %149 = vmatpush.msra.mxu0 %v122
    %150 = vmatpush.msra.mxu0 %v121
    %151 = vmatpush.msra.mxu0 %v120
    %152 = vmatpush.msra.mxu0 %v119
    %153 = vmatpush.msra.mxu0 %v118
    %154 = vmatmul.f32.gmra.mxu0 %v117
    %v155 = vpop.f32.mrf.mxu0
    %v156 = vadd.f32 %v136, %v155
    %157 = vdwg.mxu0
    %vm158 = vcmask 130048
    %159 = vst.msk [vmem:[#allocation5] sm:$0xff] %vm158, %v156
    // Predicated region
    $region34: #{fully_connected_forward.1} parent=1 // pred_check
      _
    $region35: #{fully_connected_forward.1} parent=1 // pred_check_branch
      %161 = sbr.rel (0) target = $region37
    $region36: #{fully_connected_forward.1} parent=1 // pred_region
      %163 = vsyncadd [#allocation4], 0
      %s165 = sshll.u32 [#allocation5], 4
      %s166 = int_to_ptr.vmem [resolvable:$true] %s165
      %s167 = sshll.u32 %s7, 4
      %s168 = int_to_ptr.hbm [resolvable:$true] %s167
      %170 = dma.vmem_to_hbm [thread:$0]  %s166, 128, %s168, [#allocation4]
    $region37: #{fully_connected_forward.1} parent=1 // pred_fallthru
      _
    // Predicated region
    $region38: #{fully_connected_forward.1} parent=1 // pred_check
      _
    $region39: #{fully_connected_forward.1} parent=1 // pred_check_branch
      %172 = sbr.rel (0) target = $region41
    $region40: #{fully_connected_forward.1} parent=1 // pred_region
      %174 = dma.done [#allocation4], 128
    $region41: #{fully_connected_forward.1} parent=1 // pred_fallthru
      _
    %175 = vsyncpa [#allocation3], 1
    %176 = vsyncpa [#allocation4], 1

</llo_original>
